<compile_context>
chip_gen: v7x
topology: tpu7x:2x2x1
jax: 0.10.0
libtpu: 0.0.40
codegen_flags: <defaults>
</compile_context>

<pallas_src>
import math

import jax
import jax.numpy as jnp
from jax.experimental import pallas as pl
from jax.experimental.pallas import tpu as pltpu


def _alias_passthrough_kernel(x_hbm_ref, o_hbm_ref):
    # Output aliases input (input_output_aliases={0: 0}); nothing to compute,
    # nothing to move.
    del x_hbm_ref, o_hbm_ref


def _hbm_copy_kernel(x_hbm_ref, o_hbm_ref, copy_sem):
    # One whole-array HBM->HBM DMA: no VMEM staging, no vld/vst, no tiling.
    cp = pltpu.make_async_copy(x_hbm_ref, o_hbm_ref, copy_sem)
    cp.start()
    cp.wait()


def flatten_feat_net(x: jax.Array, *, copy: bool = False) -> jax.Array:
    """Pallas FlattenFeatNet.forward: (..., S, D) -> (..., S*D).

    copy=False (default): zero-copy -- the pallas output aliases the input buffer
        (donate the argument under jit to avoid even the defensive XLA copy).
    copy=True: materializes a fresh output via a single HBM->HBM DMA.
    """
    *lead, S, D = x.shape
    F = S * D
    B = math.prod(lead) if lead else 1
    itemsize = jnp.dtype(x.dtype).itemsize

    # Metadata-only flatten in the wrapper; the kernel sees a flat (B, F) buffer
    # whose shape/dtype exactly match the output (required for aliasing).
    xb = x.reshape(B, F)

    if copy:
        out = pl.pallas_call(
            _hbm_copy_kernel,
            out_shape=jax.ShapeDtypeStruct((B, F), x.dtype),
            in_specs=[pl.BlockSpec(memory_space=pl.ANY)],
            out_specs=pl.BlockSpec(memory_space=pl.ANY),
            scratch_shapes=[pltpu.SemaphoreType.DMA],
            cost_estimate=pl.CostEstimate(
                flops=0,
                transcendentals=0,
                bytes_accessed=2 * B * F * itemsize,
            ),
        )(xb)
    else:
        out = pl.pallas_call(
            _alias_passthrough_kernel,
            out_shape=jax.ShapeDtypeStruct((B, F), x.dtype),
            in_specs=[pl.BlockSpec(memory_space=pl.ANY)],
            out_specs=pl.BlockSpec(memory_space=pl.ANY),
            input_output_aliases={0: 0},
            cost_estimate=pl.CostEstimate(
                flops=0,
                transcendentals=0,
                bytes_accessed=0,
            ),
        )(xb)

    return out.reshape(*lead, F)


if __name__ == "__main__":
    # Module defaults: dim_in = (8, 256) -> dim_out = 2048; small batch = 2.
    # FlattenFeatNet has no parameters, so there is nothing to initialize.
    B, S, D = 2, 8, 256
    key = jax.random.PRNGKey(0)
    x = jax.random.normal(key, (B, S, D), dtype=jnp.float32)

    # Reference semantics: x.reshape(*x.shape[:-2], -1)
    ref = x.reshape(*x.shape[:-2], -1)

    # Default zero-copy (aliased) path.
    y = flatten_feat_net(x)
    y = jax.block_until_ready(y)
    assert y.shape == (B, S * D), y.shape
    assert y.dtype == x.dtype, y.dtype
    assert bool(jnp.array_equal(y, ref)), "alias path: mismatch vs reference reshape"

    # Explicit-copy path: single HBM->HBM DMA (fresh output buffer).
    y2 = flatten_feat_net(x, copy=True)
    y2 = jax.block_until_ready(y2)
    assert y2.shape == (B, S * D), y2.shape
    assert bool(jnp.array_equal(y2, ref)), "copy path: mismatch vs reference reshape"

    print("KERNEL_OK")
</pallas_src>

<mosaic_0001>
module attributes {stable_mosaic.version = 11 : i64} {
  func.func @_alias_passthrough_kernel(%arg0: memref<2x2048xf32, #tpu.memory_space<any>>, %arg1: memref<2x2048xf32, #tpu.memory_space<any>>) attributes {dimension_semantics = [], scalar_prefetch = 0 : i64, scratch_operands = 0 : i64, tpu.core_type = #tpu.core_type<tc>} {
    return
  }
}

</mosaic_0001>

<llo_original>
// kernel: tpu_custom_call.1
$region0: #{tpu_custom_call.1}
  #allocation0 [shape = 'u32[]', space=smem, size = 0x4, offset = 0x4, fixed_abs, tag = 'smem constant byte address 0x4 - core index']
  #allocation1 [shape = 'u32[144,128]{1,0:T(1,128)}', space=vmem, size = 0x12000, scoped, tag = 'internal scratch']
  %s0 = inlined_call_operand.hbm [shape: f32[2,2048], index: 0, kind: input, shape index: {}, may-alias: {0,1}]
  %s1 = inlined_call_operand.hbm [shape: f32[2,2048], index: 1, kind: output, shape index: {}, may-alias: {0,1}]
  %s2 = sld [smem:[#allocation0]]
  $region2: #{tpu_custom_call.1} parent=0
    _
  %s4 = ssub.s32 1, %s2
  %s5 = scalar_select 0, %s4, %s2

</llo_original>
